<compile_context>
chip_gen: v7x
topology: tpu7x:2x2x1
jax: 0.10.0
libtpu: 0.0.40
codegen_flags: <defaults>
</compile_context>

<pallas_src>
import functools

import jax
import jax.numpy as jnp
from jax.experimental import pallas as pl
from jax.experimental.pallas import tpu as pltpu


def _round_up(x: int, m: int) -> int:
    return ((x + m - 1) // m) * m


def _choose_tile(dim: int, align: int, max_tile: int) -> int:
    """Smallest align-multiple tile covering `dim` with ceil(dim/max_tile) tiles.

    This bounds padding waste to < 1 sub-tile instead of rounding the whole
    dimension up to `max_tile`.
    """
    dim = max(int(dim), 1)
    aligned = _round_up(dim, align)
    if aligned <= max_tile:
        return aligned
    n_tiles = -(-dim // max_tile)          # ceil
    return _round_up(-(-dim // n_tiles), align)


def _split_for_two_cores(tm: int, tn: int, Mp: int, Np: int):
    """Ensure >=2 parallel output tiles when possible (v7x has 2 TensorCores)."""
    if (Mp // tm) * (Np // tn) >= 2:
        return tm, tn
    if tn % 256 == 0:                      # halved tn stays a 128-multiple
        return tm, tn // 2
    if tm % 16 == 0 and tm >= 16:          # halved tm stays an 8-multiple
        return tm // 2, tn
    return tm, tn


# ----------------------------------------------------------------------------
# Kernels
# ----------------------------------------------------------------------------
def _mm_kernel_direct(x_ref, w_ref, o_ref, *, precision, single_k):
    """Accumulate directly into the resident output block (f32 output or gk==1)."""
    if single_k:
        o_ref[...] = jnp.dot(
            x_ref[...], w_ref[...],
            preferred_element_type=jnp.float32,
            precision=precision,
        ).astype(o_ref.dtype)
    else:
        @pl.when(pl.program_id(2) == 0)
        def _():
            o_ref[...] = jnp.zeros_like(o_ref)

        o_ref[...] += jnp.dot(
            x_ref[...], w_ref[...],
            preferred_element_type=jnp.float32,
            precision=precision,
        ).astype(o_ref.dtype)


def _mm_kernel_scratch(x_ref, w_ref, o_ref, acc_ref, *, precision):
    """f32 scratch accumulator; only used for non-f32 outputs with gk > 1."""
    k = pl.program_id(2)

    @pl.when(k == 0)
    def _():
        acc_ref[...] = jnp.zeros_like(acc_ref)

    acc_ref[...] += jnp.dot(
        x_ref[...], w_ref[...],
        preferred_element_type=jnp.float32,
        precision=precision,
    )

    @pl.when(k == pl.num_programs(2) - 1)
    def _():
        o_ref[...] = acc_ref[...].astype(o_ref.dtype)


# ----------------------------------------------------------------------------
# pallas_call builder (traceable; called from jitted wrappers)
# ----------------------------------------------------------------------------
def _padded_matmul(xp, wp, *, tm, tn, tk, out_dtype, precision):
    Mp, Kp = xp.shape
    Kw, Np = wp.shape
    assert Kw == Kp, "padded K mismatch"
    out_dtype = jnp.dtype(out_dtype)

    gm, gn, gk = Mp // tm, Np // tn, Kp // tk
    grid = (gm, gn, gk)
    single_k = gk == 1
    direct = single_k or out_dtype == jnp.dtype(jnp.float32)

    # Real HBM traffic including per-tile re-streaming of both operands.
    cost = pl.CostEstimate(
        flops=2 * Mp * Np * Kp,
        transcendentals=0,
        bytes_accessed=int(
            gn * Mp * Kp * xp.dtype.itemsize        # activations re-read per N tile
            + gm * Kp * Np * wp.dtype.itemsize      # weights re-read per M tile
            + Mp * Np * out_dtype.itemsize
        ),
    )

    # Explicit VMEM budget: double-buffered inputs + double-buffered output
    # (+ accumulator if used), with headroom.  Covers v5e's 16 MiB scoped
    # default and stays safely below v7x's 64 MiB physical VMEM.
    est_vmem = (
        2 * (tm * tk * xp.dtype.itemsize + tk * tn * wp.dtype.itemsize)
        + 2 * tm * tn * out_dtype.itemsize
    )
    if not direct:
        est_vmem += tm * tn * 4
    vmem_limit = int(min(56 << 20, max(32 << 20, est_vmem * 3 // 2 + (2 << 20))))

    in_specs = [
        pl.BlockSpec((tm, tk), lambda i, j, k: (i, k)),
        pl.BlockSpec((tk, tn), lambda i, j, k: (k, j)),
    ]
    out_spec = pl.BlockSpec((tm, tn), lambda i, j, k: (i, j))

    if direct:
        kernel = functools.partial(
            _mm_kernel_direct, precision=precision, single_k=single_k
        )
        scratch = []
    else:
        kernel = functools.partial(_mm_kernel_scratch, precision=precision)
        scratch = [pltpu.VMEM((tm, tn), jnp.float32)]

    return pl.pallas_call(
        kernel,
        out_shape=jax.ShapeDtypeStruct((Mp, Np), out_dtype),
        grid=grid,
        in_specs=in_specs,
        out_specs=out_spec,
        scratch_shapes=scratch,
        compiler_params=pltpu.CompilerParams(
            dimension_semantics=("parallel", "parallel", "arbitrary"),
            vmem_limit_bytes=vmem_limit,
        ),
        cost_estimate=cost,
    )(xp, wp)


# ----------------------------------------------------------------------------
# Jitted forward (pad / cast / matmul / slice in one graph).
# If `w` is already padded to (Kp, Np) (and already bf16 when cast_bf16=True),
# the pad/cast branches are no-ops at trace time -- this is how the class
# hoists the weight preparation out of the hot path.
# ----------------------------------------------------------------------------
@functools.partial(
    jax.jit,
    static_argnames=(
        "tm", "tn", "tk", "Mp", "Np", "Kp",
        "n_rows", "n_cols", "cast_bf16", "precision",
    ),
)
def _linear_forward_jit(x, w, *, tm, tn, tk, Mp, Np, Kp,
                        n_rows, n_cols, cast_bf16, precision):
    B, K = x.shape
    Kw, N = w.shape
    out_dtype = jnp.dtype(x.dtype)

    xp = x if (Mp, Kp) == (B, K) else jnp.pad(x, ((0, Mp - B), (0, Kp - K)))
    wp = w if (Kp, Np) == (Kw, N) else jnp.pad(w, ((0, Kp - Kw), (0, Np - N)))
    if cast_bf16:
        xp = xp.astype(jnp.bfloat16)
        if wp.dtype != jnp.bfloat16:
            wp = wp.astype(jnp.bfloat16)

    out = _padded_matmul(xp, wp, tm=tm, tn=tn, tk=tk,
                         out_dtype=out_dtype, precision=precision)
    return out[:n_rows, :n_cols]


def custom_nn_linear_forward(x, w, *, use_bf16: bool = False, precision=None):
    """output = x @ w via the tiled Pallas TPU matmul (standalone convenience API).

    x: [B, in_features], w: [in_features, out_features] -> [B, out_features]
    """
    B, K = x.shape
    Kw, N = w.shape
    assert K == Kw, "in_features mismatch between input and weights"

    max_mn = 1024 if use_bf16 else 512
    max_k = 2048 if use_bf16 else 1024
    tm = _choose_tile(B, 8, max_mn)
    tn = _choose_tile(N, 128, max_mn)
    tk = _choose_tile(K, 128, max_k)
    Mp, Np, Kp = _round_up(B, tm), _round_up(N, tn), _round_up(K, tk)
    tm, tn = _split_for_two_cores(tm, tn, Mp, Np)

    return _linear_forward_jit(
        x, w, tm=tm, tn=tn, tk=tk, Mp=Mp, Np=Np, Kp=Kp,
        n_rows=B, n_cols=N, cast_bf16=use_bf16, precision=precision,
    )


class CustomNNLinearJAX:
    """JAX/Pallas port of CustomNNLinear (forward only).

    Set use_bf16=True for MXU-peak throughput (f32 accumulation, ~1e-3 rel.
    tolerance); leave False for closest parity with the f32 PyTorch reference.
    """

    def __init__(self, in_features, out_features, topk_grad_buffer,
                 *, use_bf16: bool = False, precision=None):
        assert in_features * out_features >= topk_grad_buffer
        self.in_features = in_features
        self.out_features = out_features
        self.topk_grad_buffer = topk_grad_buffer
        self.use_bf16 = use_bf16
        self.precision = precision

        self._max_mn = 1024 if use_bf16 else 512
        max_k = 2048 if use_bf16 else 1024
        self._tn = _choose_tile(out_features, 128, self._max_mn)
        self._tk = _choose_tile(in_features, 128, max_k)
        self._Np = _round_up(out_features, self._tn)
        self._Kp = _round_up(in_features, self._tk)

        # Matches the PyTorch module: weights initialized to zeros.
        self.trainable_weights = jnp.zeros((in_features, out_features), jnp.float32)
        self._wp = self._prepare_weights(self.trainable_weights)

        # Registered buffers (only touched in backward; returned as-is).
        self.topk_grads = jnp.zeros((topk_grad_buffer,), jnp.float32)
        self.pos_1st_dim_of_topk_grads = jnp.zeros((topk_grad_buffer,), jnp.int32)
        self.pos_2st_dim_of_topk_grads = jnp.zeros((topk_grad_buffer,), jnp.int32)
        self.weights_of_topk_grads = jnp.zeros((topk_grad_buffer,), jnp.float32)

    def _prepare_weights(self, w):
        # Hoisted out of the forward: pad (and cast) the weight matrix once.
        K, N = w.shape
        wp = w
        if (self._Kp, self._Np) != (K, N):
            wp = jnp.pad(w, ((0, self._Kp - K), (0, self._Np - N)))
        if self.use_bf16:
            wp = wp.astype(jnp.bfloat16)
        return wp

    def set_weights(self, new_weights):
        new_weights = jnp.asarray(new_weights, jnp.float32)
        assert new_weights.shape == (self.in_features, self.out_features)
        self.trainable_weights = new_weights
        self._wp = self._prepare_weights(new_weights)

    def __call__(self, x):
        # TODO(synk): backward-pass top-k gradient selection
        # (_C.custom_nn_linear_backward) is not forward semantics; not implemented.
        B, K = x.shape
        assert K == self.in_features

        tm = _choose_tile(B, 8, self._max_mn)
        Mp = _round_up(B, tm)
        tm, tn = _split_for_two_cores(tm, self._tn, Mp, self._Np)

        output = _linear_forward_jit(
            x, self._wp, tm=tm, tn=tn, tk=self._tk,
            Mp=Mp, Np=self._Np, Kp=self._Kp,
            n_rows=B, n_cols=self.out_features,
            cast_bf16=self.use_bf16, precision=self.precision,
        )
        return (
            output,
            self.topk_grads,
            self.weights_of_topk_grads,
            self.pos_1st_dim_of_topk_grads,
            self.pos_2st_dim_of_topk_grads,
        )


if __name__ == "__main__":
    key = jax.random.PRNGKey(0)
    k_w, k_x, k_w2, k_x2, k_w3, k_x3 = jax.random.split(key, 6)

    # --- 1) Small f32 module test (matches constructor semantics) -----------
    in_features, out_features, topk_grad_buffer, batch = 32, 16, 64, 8
    module = CustomNNLinearJAX(in_features, out_features, topk_grad_buffer)
    module.set_weights(
        jax.random.normal(k_w, (in_features, out_features), jnp.float32) * 0.02
    )
    x = jax.random.normal(k_x, (batch, in_features), jnp.float32)

    out, topk_grads, w_topk, pos1, pos2 = module(x)
    out = jax.block_until_ready(out)
    ref = x @ module.trainable_weights
    assert out.shape == (batch, out_features)
    assert jnp.allclose(out, ref, atol=1e-5, rtol=1e-5)
    assert topk_grads.shape == (topk_grad_buffer,)
    assert w_topk.shape == (topk_grad_buffer,)
    assert pos1.shape == (topk_grad_buffer,) and pos1.dtype == jnp.int32
    assert pos2.shape == (topk_grad_buffer,) and pos2.dtype == jnp.int32

    # --- 2) bf16-operand module (cached pre-padded/pre-cast weights), ragged -
    B2, K2, N2 = 100, 700, 200
    module_bf16 = CustomNNLinearJAX(K2, N2, 128, use_bf16=True)
    w2 = jax.random.normal(k_w2, (K2, N2), jnp.float32) * 0.02
    module_bf16.set_weights(w2)
    x2 = jax.random.normal(k_x2, (B2, K2), jnp.float32)
    out2 = jax.block_until_ready(module_bf16(x2)[0])
    ref2 = x2 @ w2
    assert out2.shape == (B2, N2) and out2.dtype == jnp.float32
    assert jnp.allclose(out2, ref2, atol=3e-2, rtol=3e-2)

    # --- 3) Standalone f32 path with a multi-step K sweep --------------------
    B3, K3, N3 = 64, 2500, 130
    x3 = jax.random.normal(k_x3, (B3, K3), jnp.float32)
    w3 = jax.random.normal(k_w3, (K3, N3), jnp.float32) * 0.01
    out3 = jax.block_until_ready(custom_nn_linear_forward(x3, w3))
    ref3 = x3 @ w3
    assert out3.shape == (B3, N3)
    assert jnp.allclose(out3, ref3, atol=5e-3, rtol=5e-3)

    print("KERNEL_OK")
</pallas_src>

<mosaic_0001>
module attributes {stable_mosaic.version = 11 : i64} {
  func.func @_mm_kernel_direct(%arg0: i32, %arg1: i32, %arg2: i32, %arg3: memref<8x128xf32, #tpu.memory_space<vmem>>, %arg4: memref<128x128xf32, #tpu.memory_space<vmem>>, %arg5: memref<8x128xf32, #tpu.memory_space<vmem>>) attributes {dimension_semantics = [#tpu.dimension_semantics<parallel>, #tpu.dimension_semantics<parallel>, #tpu.dimension_semantics<arbitrary>], iteration_bounds = array<i64: 1, 1, 1>, scalar_prefetch = 0 : i64, scratch_operands = 0 : i64, tpu.core_type = #tpu.core_type<tc>, window_params = [{transform_indices = @transform_0, window_bounds = array<i64: 8, 128>}, {transform_indices = @transform_1, window_bounds = array<i64: 128, 128>}, {transform_indices = @transform_2, window_bounds = array<i64: 8, 128>}]} {
    %c0 = arith.constant 0 : index
    %c0_0 = arith.constant 0 : index
    %0 = vector.load %arg3[%c0, %c0_0] : memref<8x128xf32, #tpu.memory_space<vmem>>, vector<8x128xf32>
    %c0_1 = arith.constant 0 : index
    %c0_2 = arith.constant 0 : index
    %1 = vector.load %arg4[%c0_1, %c0_2] : memref<128x128xf32, #tpu.memory_space<vmem>>, vector<128x128xf32>
    %cst = arith.constant dense<0.000000e+00> : vector<8x128xf32>
    %2 = tpu.matmul %0, %1, %cst {dimension_numbers = #tpu.dot_dimension_numbers<[1], [0], [0], [1], [0, 0, 1, 1], [], []>} : vector<8x128xf32>, vector<128x128xf32>, vector<8x128xf32> -> vector<8x128xf32>
    %c0_3 = arith.constant 0 : index
    %c0_4 = arith.constant 0 : index
    %3 = vector.load %arg5[%c0_3, %c0_4] : memref<8x128xf32, #tpu.memory_space<vmem>>, vector<8x128xf32>
    tpu.vector_store %arg5[%c0_3, %c0_4], %2 {strides = array<i32>} : memref<8x128xf32, #tpu.memory_space<vmem>>, vector<8x128xf32>,
    return
  }
  func.func @transform_0(%arg0: i32, %arg1: i32, %arg2: i32) -> (i32, i32) {
    %c0_i32 = arith.constant 0 : i32
    return %arg0, %arg2 : i32, i32
  }
  func.func @transform_1(%arg0: i32, %arg1: i32, %arg2: i32) -> (i32, i32) {
    %c0_i32 = arith.constant 0 : i32
    return %arg2, %arg1 : i32, i32
  }
  func.func @transform_2(%arg0: i32, %arg1: i32, %arg2: i32) -> (i32, i32) {
    %c0_i32 = arith.constant 0 : i32
    return %arg0, %arg1 : i32, i32
  }
}

</mosaic_0001>

<llo_original>
// kernel: _linear_forward_jit.1
$region0: #{_linear_forward_jit.1}
  #allocation0 [shape = 'u32[]', space=smem, size = 0x4, offset = 0x4, fixed_abs, tag = 'smem constant byte address 0x4 - core index']
  #allocation1 [shape = 'u32[144,128]{1,0:T(1,128)}', space=vmem, size = 0x12000, scoped, tag = 'internal scratch']
  %s0 = inlined_call_operand.vmem [shape: f32[8,128], index: 0, kind: input, shape index: {}]
  %s1 = inlined_call_operand.hbm [shape: f32[128,128], index: 1, kind: input, shape index: {}]
  %s2 = inlined_call_operand.hbm [shape: f32[8,128], index: 2, kind: output, shape index: {}]
  %s3 = sld [smem:[#allocation0]]
  $region22: #{_linear_forward_jit.1} parent=0
    _
  %s5 = ssub.s32 1, %s3
  %s6 = scalar_select 0, %s5, %s3
  $region1: #{_linear_forward_jit.1} parent=0
    #allocation2 [shape = 'u8[65536]{0}', space=vmem, size = 0x10000, scoped, tag = 'input window, operand 1, single buffered']
    #allocation3 [shape = 's32[1]{0}', space=sflag, size = 0x4, scoped, tag = 'scoped memory for _linear_forward_jit.1']
    #allocation4 [shape = 's32[1]{0}', space=sflag, size = 0x4, scoped, tag = 'scoped memory for _linear_forward_jit.1']
    #allocation5 [shape = 'u8[4096]{0}', space=vmem, size = 0x1000, scoped, tag = 'output window, operand 0, single buffered']
    %7 = vsyncpa [#allocation3], 0
    %8 = vsyncpa [#allocation4], 0
    // Predicated region
    $region2: #{_linear_forward_jit.1} parent=1 // pred_check
      _
    $region3: #{_linear_forward_jit.1} parent=1 // pred_check_branch
      %10 = sbr.rel (0) target = $region5
    $region4: #{_linear_forward_jit.1} parent=1 // pred_region
      _
    $region5: #{_linear_forward_jit.1} parent=1 // pred_fallthru
      _
    // Predicated region
    $region6: #{_linear_forward_jit.1} parent=1 // pred_check
      _
    $region7: #{_linear_forward_jit.1} parent=1 // pred_check_branch
      %12 = sbr.rel (0) target = $region9
    $region8: #{_linear_forward_jit.1} parent=1 // pred_region
      %s14 = ssub.s32 2048, 2048
      %15 = vsyncadd [#allocation3], %s14
      %s16 = sshll.u32 [#allocation2], 4
      %s17 = int_to_ptr.vmem [resolvable:$true] %s16
      %22 = dma.hbm_to_vmem [thread:$0]  %s1, 2048, %s17, [#allocation3], 128, 128, 8
    $region9: #{_linear_forward_jit.1} parent=1 // pred_fallthru
      _
    // Predicated region
    $region10: #{_linear_forward_jit.1} parent=1 // pred_check
      _
    $region11: #{_linear_forward_jit.1} parent=1 // pred_check_branch
      %24 = sbr.rel (0) target = $region13
    $region12: #{_linear_forward_jit.1} parent=1 // pred_region
      %25 = dma.done [#allocation3], 2048
    $region13: #{_linear_forward_jit.1} parent=1 // pred_fallthru
      _
    %v26 = vld [vmem:[%s0] sm:$0xff]
    %v27 = vld [vmem:[#allocation2] sm:$0xff]
    %v28 = vld [vmem:[#allocation2 + $0x8] sm:$0xff]
    %v29 = vld [vmem:[#allocation2 + $0x10] sm:$0xff]
    %v30 = vld [vmem:[#allocation2 + $0x18] sm:$0xff]
    %v31 = vld [vmem:[#allocation2 + $0x20] sm:$0xff]
    %v32 = vld [vmem:[#allocation2 + $0x28] sm:$0xff]
    %v33 = vld [vmem:[#allocation2 + $0x30] sm:$0xff]
    %v34 = vld [vmem:[#allocation2 + $0x38] sm:$0xff]
    %v35 = vld [vmem:[#allocation2 + $0x40] sm:$0xff]
    %v36 = vld [vmem:[#allocation2 + $0x48] sm:$0xff]
    %v37 = vld [vmem:[#allocation2 + $0x50] sm:$0xff]
    %v38 = vld [vmem:[#allocation2 + $0x58] sm:$0xff]
    %v39 = vld [vmem:[#allocation2 + $0x60] sm:$0xff]
    %v40 = vld [vmem:[#allocation2 + $0x68] sm:$0xff]
    %v41 = vld [vmem:[#allocation2 + $0x70] sm:$0xff]
    %v42 = vld [vmem:[#allocation2 + $0x78] sm:$0xff]
    %43 = vmatprep.subr.mxu0 0.0
    %44 = vmatpush1.msra.mxu0 %v27
    %45 = vmatprep.subr.mxu0 0.0
    %46 = vmatpush1.msra.mxu0 %v28
    %47 = vmatprep.subr.mxu0 0.0
    %48 = vmatpush1.msra.mxu0 %v29
    %49 = vmatprep.subr.mxu0 0.0
    %50 = vmatpush1.msra.mxu0 %v30
    %51 = vmatprep.subr.mxu0 0.0
    %52 = vmatpush1.msra.mxu0 %v31
    %53 = vmatprep.subr.mxu0 0.0
    %54 = vmatpush1.msra.mxu0 %v32
    %55 = vmatprep.subr.mxu0 0.0
    %56 = vmatpush1.msra.mxu0 %v33
    %57 = vmatprep.subr.mxu0 0.0
    %58 = vmatpush1.msra.mxu0 %v34
    %59 = vmatprep.subr.mxu0 0.0
    %60 = vmatpush1.msra.mxu0 %v35
    %61 = vmatprep.subr.mxu0 0.0
    %62 = vmatpush1.msra.mxu0 %v36
    %63 = vmatprep.subr.mxu0 0.0
    %64 = vmatpush1.msra.mxu0 %v37
    %65 = vmatprep.subr.mxu0 0.0
    %66 = vmatpush1.msra.mxu0 %v38
    %67 = vmatprep.subr.mxu0 0.0
    %68 = vmatpush1.msra.mxu0 %v39
    %69 = vmatprep.subr.mxu0 0.0
    %70 = vmatpush1.msra.mxu0 %v40
    %71 = vmatprep.subr.mxu0 0.0
    %72 = vmatpush1.msra.mxu0 %v41
    %73 = vmatprep.subr.mxu0 0.0
    %74 = vmatpush1.msra.mxu0 %v42
    %75 = vmatprep.subr.mxu0 0.0
    %76 = vmatpush1.msra.mxu0 0.0
    %77 = vmatprep.subr.mxu0 0.0
    %78 = vmatpush1.msra.mxu0 0.0
    %79 = vmatprep.subr.mxu0 0.0
    %80 = vmatpush1.msra.mxu0 0.0
    %81 = vmatprep.subr.mxu0 0.0
    %82 = vmatpush1.msra.mxu0 0.0
    %83 = vmatprep.subr.mxu0 0.0
    %84 = vmatpush1.msra.mxu0 0.0
    %85 = vmatprep.subr.mxu0 0.0
    %86 = vmatpush1.msra.mxu0 0.0
    %87 = vmatprep.subr.mxu0 0.0
    %88 = vmatpush1.msra.mxu0 0.0
    %89 = vmatprep.subr.mxu0 0.0
    %90 = vmatpush1.msra.mxu0 0.0
    %91 = vmatprep.subr.mxu0 0.0
    %92 = vmatpush1.msra.mxu0 0.0
    %93 = vmatprep.subr.mxu0 0.0
    %94 = vmatpush1.msra.mxu0 0.0
    %95 = vmatprep.subr.mxu0 0.0
    %96 = vmatpush1.msra.mxu0 0.0
    %97 = vmatprep.subr.mxu0 0.0
    %98 = vmatpush1.msra.mxu0 0.0
    %99 = vmatprep.subr.mxu0 0.0
    %100 = vmatpush1.msra.mxu0 0.0
    %101 = vmatprep.subr.mxu0 0.0
    %102 = vmatpush1.msra.mxu0 0.0
    %103 = vmatprep.subr.mxu0 0.0
    %104 = vmatpush1.msra.mxu0 0.0
    %105 = vmatprep.subr.mxu0 0.0
    %106 = vmatpush1.msra.mxu0 0.0
    %107 = vmatprep.mubr.f32.mxu0 0.0
    %108 = vmatmul.mubr.f32.gmra.mrb[0].mxu0 %v26
    %v109 = vpop.f32.mrb[0].mxu0
    %v110 = vadd.f32 0.0, %v109
    %v111 = vpop.f32.mrb[0].mxu0
    %112 = vdwg.mxu0
    %113 = vst [vmem:[#allocation5] sm:$0xff] %v110
    // Predicated region
    $region14: #{_linear_forward_jit.1} parent=1 // pred_check
      _
    $region15: #{_linear_forward_jit.1} parent=1 // pred_check_branch
      %115 = sbr.rel (0) target = $region17
    $region16: #{_linear_forward_jit.1} parent=1 // pred_region
      %s117 = ssub.s32 128, 128
      %118 = vsyncadd [#allocation4], %s117
      %s120 = sshll.u32 [#allocation5], 4
      %s121 = int_to_ptr.vmem [resolvable:$true] %s120
      %123 = dma.vmem_to_hbm [thread:$0]  %s121, 128, %s2, [#allocation4]
    $region17: #{_linear_forward_jit.1} parent=1 // pred_fallthru
      _
    // Predicated region
    $region18: #{_linear_forward_jit.1} parent=1 // pred_check
      _
    $region19: #{_linear_forward_jit.1} parent=1 // pred_check_branch
      %125 = sbr.rel (0) target = $region21
    $region20: #{_linear_forward_jit.1} parent=1 // pred_region
      %126 = dma.done [#allocation4], 128
    $region21: #{_linear_forward_jit.1} parent=1 // pred_fallthru
      _
    %127 = vsyncpa [#allocation3], 1
    %128 = vsyncpa [#allocation4], 1

</llo_original>
